<compile_context>
chip_gen: v5e
topology: v5e:2x2
jax: 0.10.0
libtpu: 0.0.40
codegen_flags: <defaults>
</compile_context>

<pallas_src>
import functools

import jax
import jax.numpy as jnp
from jax.experimental import pallas as pl
from jax.experimental.pallas import tpu as pltpu  # noqa: F401  (kept for parity / future scratch use)


# ----------------------------------------------------------------------------
# Fused kernel: GRU(128->H, last hidden) + Linear(768->H) + relu->fc1->relu->fc2
# ----------------------------------------------------------------------------
def multi_model_kernel(
    x_ref,        # (T, 128)      speech sequence
    lang_ref,     # (1, 768)      language vector
    wih_ref,      # (128, 3H)     fused W_ih^T, gate order [r|z|n]
    whh_ref,      # (H, 3H)       fused W_hh^T, gate order [r|z|n]
    lin_w_ref,    # (768, H)      language Linear weight^T
    bias_ref,     # (5, 3H)       row0: gate bias (b_ih_r+b_hh_r | b_ih_z+b_hh_z | b_ih_n)
                  #               row1[:H]: b_hh_n  row2[:H]: lin_b
                  #               row3[:O]: fc1_b   row4[:S]: fc2_b
    head_w_ref,   # (2H+O, W)     rows 0:H fc1|gru half, H:2H fc1|lang half,
                  #               2H:2H+O fc2 (cols :S used)
    o_ref,        # (1, S)
):
    T = x_ref.shape[0]
    H = whh_ref.shape[0]
    H2 = 2 * H
    O = head_w_ref.shape[0] - 2 * H          # out_dims
    S = o_ref.shape[1]                       # n_scores

    # --- one-time loads + static slices (outside the serial loop) -----------
    bias = bias_ref[...]                     # (5, 3H)
    b_gates = bias[0:1, :]                   # (1, 3H)
    bhh_n = bias[1:2, :H]                    # (1, H)
    lin_b = bias[2:3, :H]                    # (1, H)
    b1 = bias[3:4, :O]                       # (1, O)
    b2 = bias[4:5, :S]                       # (1, S)

    head_w = head_w_ref[...]                 # (2H+O, W)
    w1a = head_w[0:H, :O]                    # (H, O)  fc1 over gru feature
    w1b = head_w[H:H2, :O]                   # (H, O)  fc1 over language feature
    w2 = head_w[H2:H2 + O, :S]               # (O, S)

    # --- big independent MXU work first, so it overlaps the serial chain ----
    # Full-sequence fused input gates: ONE (T,128)@(128,3H) matmul, kept in
    # vregs ((8,96) f32 == one vreg); b_hh_{r,z} already folded into b_gates.
    gi = jnp.dot(x_ref[...], wih_ref[...],
                 preferred_element_type=jnp.float32) + b_gates

    # Language branch of the head is independent of the recurrence: compute it
    # (including its fc1 half) before the loop, off the critical tail.
    lang_feat = jnp.dot(lang_ref[...], lin_w_ref[...],
                        preferred_element_type=jnp.float32) + lin_b
    f1 = jnp.maximum(lang_feat, 0.0)
    y_lang = jnp.dot(f1, w1b, preferred_element_type=jnp.float32) + b1

    whh = whh_ref[...]                       # (H, 3H)

    # --- serial GRU recurrence (PyTorch gate order r, z, n), fully unrolled -
    # Per step: one fused (1,H)@(H,3H) MXU matmul, one sigmoid over the packed
    # [r|z] lanes, one tanh for n.
    h = jnp.zeros((1, H), jnp.float32)
    for t in range(T):                       # T=8, static unroll
        gh = jnp.dot(h, whh, preferred_element_type=jnp.float32)   # (1, 3H)
        gi_t = gi[t:t + 1, :]                                       # (1, 3H)
        rz = jax.nn.sigmoid(gi_t[:, :H2] + gh[:, :H2])              # fused r|z
        r = rz[:, :H]
        z = rz[:, H:]
        n = jnp.tanh(gi_t[:, H2:] + r * (gh[:, H2:] + bhh_n))
        h = (1.0 - z) * n + z * h

    # --- head tail: dropout(id)->relu->fc1(gru half)+y_lang->relu->fc2 ------
    f0 = jnp.maximum(h, 0.0)
    y = jnp.dot(f0, w1a, preferred_element_type=jnp.float32) + y_lang
    y = jnp.maximum(y, 0.0)
    o_ref[...] = jnp.dot(y, w2, preferred_element_type=jnp.float32) + b2


@functools.partial(jax.jit, static_argnames=("n_scores",))
def multi_model_forward(prep, x_seq, lang_row, *, n_scores):
    """prep: dict from prepare_params(); x_seq: (T,128); lang_row: (1,768)."""
    return pl.pallas_call(
        multi_model_kernel,
        out_shape=jax.ShapeDtypeStruct((1, n_scores), jnp.float32),
    )(
        x_seq, lang_row,
        prep["wih_rzn"], prep["whh_rzn"], prep["lin_w_t"],
        prep["bias_slab"], prep["head_w"],
    )


# ----------------------------------------------------------------------------
# One-time parameter prep: transposes, gate fusion, bias folding, input packing
# (all hoisted out of the per-forward path).
# ----------------------------------------------------------------------------
def prepare_params(p):
    H = p["gru_w_hh"].shape[1]
    O = p["fc1_w"].shape[0]          # out_dims
    S = p["fc2_w"].shape[0]          # n_scores
    G = 3 * H
    assert max(H, O, S) <= G, "bias slab rows must fit in 3H lanes"

    def gate(arr, g):                # PyTorch GRU gate order along dim 0: r, z, n
        return arr[g * H:(g + 1) * H]

    # Fused per-gate transposed weights, gates packed along the lane dim.
    wih_rzn = jnp.concatenate([gate(p["gru_w_ih"], g).T for g in range(3)], axis=1)  # (128, 3H)
    whh_rzn = jnp.concatenate([gate(p["gru_w_hh"], g).T for g in range(3)], axis=1)  # (H, 3H)

    # Gate bias: fold b_hh_{r,z} into b_ih_{r,z}; b_hh_n stays separate (scaled by r).
    b_gates = jnp.concatenate([
        gate(p["gru_b_ih"], 0) + gate(p["gru_b_hh"], 0),
        gate(p["gru_b_ih"], 1) + gate(p["gru_b_hh"], 1),
        gate(p["gru_b_ih"], 2),
    ])                                                   # (3H,)
    bhh_n = gate(p["gru_b_hh"], 2)                       # (H,)

    def pad_row(v):
        return jnp.zeros((G,), jnp.float32).at[:v.shape[0]].set(v)

    bias_slab = jnp.stack([
        b_gates,
        pad_row(bhh_n),
        pad_row(p["lin_b"]),
        pad_row(p["fc1_b"]),
        pad_row(p["fc2_b"]),
    ], axis=0)                                           # (5, 3H)

    # Head weights packed into one array.
    W = max(O, S)
    fc1_t = jnp.zeros((2 * H, W), jnp.float32).at[:, :O].set(p["fc1_w"].T)
    fc2_t = jnp.zeros((O, W), jnp.float32).at[:, :S].set(p["fc2_w"].T)
    head_w = jnp.concatenate([fc1_t, fc2_t], axis=0)     # (2H + O, W)

    return {
        "wih_rzn": wih_rzn,
        "whh_rzn": whh_rzn,
        "lin_w_t": p["lin_w"].T,                         # (768, H)
        "bias_slab": bias_slab,
        "head_w": head_w,
    }


# ----------------------------------------------------------------------------
# Pure-JAX reference (PyTorch semantics) for correctness checking
# ----------------------------------------------------------------------------
def gru_ref(x, w_ih, w_hh, b_ih, b_hh):
    H = w_hh.shape[1]
    h = jnp.zeros((H,), jnp.float32)
    for t in range(x.shape[0]):
        gi = w_ih @ x[t] + b_ih
        gh = w_hh @ h + b_hh
        r = jax.nn.sigmoid(gi[:H] + gh[:H])
        z = jax.nn.sigmoid(gi[H:2 * H] + gh[H:2 * H])
        n = jnp.tanh(gi[2 * H:] + r * gh[2 * H:])
        h = (1.0 - z) * n + z * h
    return h[None, :]


def multi_model_ref(p, data):
    f0 = gru_ref(data[0], p["gru_w_ih"], p["gru_w_hh"], p["gru_b_ih"], p["gru_b_hh"])
    f1 = data[1][None, :] @ p["lin_w"].T + p["lin_b"]
    y = jnp.concatenate([f0, f1], axis=1)
    y = jnp.maximum(y, 0.0)
    y = y @ p["fc1_w"].T + p["fc1_b"]
    y = jnp.maximum(y, 0.0)
    return y @ p["fc2_w"].T + p["fc2_b"]


# ----------------------------------------------------------------------------
def init_params(key, in_dims, out_dims, n_scores, n_mods):
    ks = jax.random.split(key, 10)

    def u(k, shape, fan_in):
        bound = 1.0 / jnp.sqrt(jnp.float32(fan_in))
        return jax.random.uniform(k, shape, jnp.float32, -bound, bound)

    H = in_dims
    return {
        # GRU(128 -> H), PyTorch weight layout (3H, in) / (3H, H)
        "gru_w_ih": u(ks[0], (3 * H, 128), H),
        "gru_w_hh": u(ks[1], (3 * H, H), H),
        "gru_b_ih": u(ks[2], (3 * H,), H),
        "gru_b_hh": u(ks[3], (3 * H,), H),
        # Linear(768 -> H)
        "lin_w": u(ks[4], (H, 768), 768),
        "lin_b": u(ks[5], (H,), 768),
        # fc1(H * n_mods -> out_dims)
        "fc1_w": u(ks[6], (out_dims, H * n_mods), H * n_mods),
        "fc1_b": u(ks[7], (out_dims,), H * n_mods),
        # fc2(out_dims -> n_scores)
        "fc2_w": u(ks[8], (n_scores, out_dims), out_dims),
        "fc2_b": u(ks[9], (n_scores,), out_dims),
    }


if __name__ == "__main__":
    in_dims, out_dims, n_scores = 32, 16, 4
    seq = 8
    n_mods = 2  # {'spk_speech', 'spk_language'}

    key = jax.random.PRNGKey(0)
    kp, kx0, kx1 = jax.random.split(key, 3)
    params = init_params(kp, in_dims, out_dims, n_scores, n_mods)

    x_seq = jax.random.normal(kx0, (seq, 128), jnp.float32)     # spk_speech
    lang = jax.random.normal(kx1, (768,), jnp.float32)          # spk_language

    # One-time prep (fused weights, folded biases, packed inputs).
    prep = jax.tree_util.tree_map(jax.block_until_ready, prepare_params(params))
    lang_row = lang.reshape(1, -1)

    out = multi_model_forward(prep, x_seq, lang_row, n_scores=n_scores)
    out = jax.block_until_ready(out)

    ref = multi_model_ref(params, [x_seq, lang])
    assert out.shape == (1, n_scores)
    assert jnp.allclose(out, ref, atol=1e-4, rtol=1e-4), (out, ref)

    print("KERNEL_OK")
</pallas_src>

<mosaic_0001>
module attributes {stable_mosaic.version = 11 : i64} {
  func.func @multi_model_kernel(%arg0: memref<8x128xf32, #tpu.memory_space<vmem>>, %arg1: memref<1x768xf32, #tpu.memory_space<vmem>>, %arg2: memref<128x96xf32, #tpu.memory_space<vmem>>, %arg3: memref<32x96xf32, #tpu.memory_space<vmem>>, %arg4: memref<768x32xf32, #tpu.memory_space<vmem>>, %arg5: memref<5x96xf32, #tpu.memory_space<vmem>>, %arg6: memref<80x16xf32, #tpu.memory_space<vmem>>, %arg7: memref<1x4xf32, #tpu.memory_space<vmem>>) attributes {dimension_semantics = [], scalar_prefetch = 0 : i64, scratch_operands = 0 : i64, tpu.core_type = #tpu.core_type<tc>} {
    %c0 = arith.constant 0 : index
    %c0_0 = arith.constant 0 : index
    %0 = vector.load %arg5[%c0, %c0_0] : memref<5x96xf32, #tpu.memory_space<vmem>>, vector<5x96xf32>
    %1 = vector.extract_strided_slice %0 {offsets = [0, 0], sizes = [1, 96], strides = [1, 1]} : vector<5x96xf32> to vector<1x96xf32>
    %2 = vector.extract_strided_slice %0 {offsets = [1, 0], sizes = [1, 32], strides = [1, 1]} : vector<5x96xf32> to vector<1x32xf32>
    %3 = vector.extract_strided_slice %0 {offsets = [2, 0], sizes = [1, 32], strides = [1, 1]} : vector<5x96xf32> to vector<1x32xf32>
    %4 = vector.extract_strided_slice %0 {offsets = [3, 0], sizes = [1, 16], strides = [1, 1]} : vector<5x96xf32> to vector<1x16xf32>
    %5 = vector.extract_strided_slice %0 {offsets = [4, 0], sizes = [1, 4], strides = [1, 1]} : vector<5x96xf32> to vector<1x4xf32>
    %c0_1 = arith.constant 0 : index
    %c0_2 = arith.constant 0 : index
    %6 = vector.load %arg6[%c0_1, %c0_2] : memref<80x16xf32, #tpu.memory_space<vmem>>, vector<80x16xf32>
    %7 = vector.extract_strided_slice %6 {offsets = [0, 0], sizes = [32, 16], strides = [1, 1]} : vector<80x16xf32> to vector<32x16xf32>
    %8 = vector.extract_strided_slice %6 {offsets = [32, 0], sizes = [32, 16], strides = [1, 1]} : vector<80x16xf32> to vector<32x16xf32>
    %9 = vector.extract_strided_slice %6 {offsets = [64, 0], sizes = [16, 4], strides = [1, 1]} : vector<80x16xf32> to vector<16x4xf32>
    %c0_3 = arith.constant 0 : index
    %c0_4 = arith.constant 0 : index
    %10 = vector.load %arg0[%c0_3, %c0_4] : memref<8x128xf32, #tpu.memory_space<vmem>>, vector<8x128xf32>
    %c0_5 = arith.constant 0 : index
    %c0_6 = arith.constant 0 : index
    %11 = vector.load %arg2[%c0_5, %c0_6] : memref<128x96xf32, #tpu.memory_space<vmem>>, vector<128x96xf32>
    %cst = arith.constant dense<0.000000e+00> : vector<8x96xf32>
    %12 = tpu.matmul %10, %11, %cst {dimension_numbers = #tpu.dot_dimension_numbers<[1], [0], [0], [1], [0, 0, 1, 1], [], []>} : vector<8x128xf32>, vector<128x96xf32>, vector<8x96xf32> -> vector<8x96xf32>
    %13 = vector.broadcast %1 : vector<1x96xf32> to vector<8x96xf32>
    %14 = arith.addf %12, %13 : vector<8x96xf32>
    %c0_7 = arith.constant 0 : index
    %c0_8 = arith.constant 0 : index
    %15 = vector.load %arg1[%c0_7, %c0_8] : memref<1x768xf32, #tpu.memory_space<vmem>>, vector<1x768xf32>
    %c0_9 = arith.constant 0 : index
    %c0_10 = arith.constant 0 : index
    %16 = vector.load %arg4[%c0_9, %c0_10] : memref<768x32xf32, #tpu.memory_space<vmem>>, vector<768x32xf32>
    %cst_11 = arith.constant dense<0.000000e+00> : vector<1x32xf32>
    %17 = tpu.matmul %15, %16, %cst_11 {dimension_numbers = #tpu.dot_dimension_numbers<[1], [0], [0], [1], [0, 0, 1, 1], [], []>} : vector<1x768xf32>, vector<768x32xf32>, vector<1x32xf32> -> vector<1x32xf32>
    %18 = arith.addf %17, %3 : vector<1x32xf32>
    %cst_12 = arith.constant 0.000000e+00 : f32
    %19 = vector.broadcast %cst_12 : f32 to vector<1x32xf32>
    %20 = arith.maximumf %18, %19 : vector<1x32xf32>
    %cst_13 = arith.constant dense<0.000000e+00> : vector<1x16xf32>
    %21 = tpu.matmul %20, %8, %cst_13 {dimension_numbers = #tpu.dot_dimension_numbers<[1], [0], [0], [1], [0, 0, 1, 1], [], []>} : vector<1x32xf32>, vector<32x16xf32>, vector<1x16xf32> -> vector<1x16xf32>
    %22 = arith.addf %21, %4 : vector<1x16xf32>
    %c0_14 = arith.constant 0 : index
    %c0_15 = arith.constant 0 : index
    %23 = vector.load %arg3[%c0_14, %c0_15] : memref<32x96xf32, #tpu.memory_space<vmem>>, vector<32x96xf32>
    %cst_16 = arith.constant 0.000000e+00 : f32
    %24 = vector.broadcast %cst_16 : f32 to vector<1x32xf32>
    %cst_17 = arith.constant dense<0.000000e+00> : vector<1x96xf32>
    %25 = tpu.matmul %24, %23, %cst_17 {dimension_numbers = #tpu.dot_dimension_numbers<[1], [0], [0], [1], [0, 0, 1, 1], [], []>} : vector<1x32xf32>, vector<32x96xf32>, vector<1x96xf32> -> vector<1x96xf32>
    %26 = vector.extract_strided_slice %14 {offsets = [0, 0], sizes = [1, 96], strides = [1, 1]} : vector<8x96xf32> to vector<1x96xf32>
    %27 = vector.extract_strided_slice %26 {offsets = [0, 0], sizes = [1, 64], strides = [1, 1]} : vector<1x96xf32> to vector<1x64xf32>
    %28 = vector.extract_strided_slice %25 {offsets = [0, 0], sizes = [1, 64], strides = [1, 1]} : vector<1x96xf32> to vector<1x64xf32>
    %29 = arith.addf %27, %28 : vector<1x64xf32>
    %30 = arith.negf %29 : vector<1x64xf32>
    %31 = math.exp %30 : vector<1x64xf32>
    %cst_18 = arith.constant 1.000000e+00 : f32
    %32 = vector.broadcast %cst_18 : f32 to vector<1x64xf32>
    %33 = arith.addf %32, %31 : vector<1x64xf32>
    %34 = arith.divf %32, %33 : vector<1x64xf32>
    %35 = vector.extract_strided_slice %34 {offsets = [0, 0], sizes = [1, 32], strides = [1, 1]} : vector<1x64xf32> to vector<1x32xf32>
    %36 = vector.extract_strided_slice %34 {offsets = [0, 32], sizes = [1, 32], strides = [1, 1]} : vector<1x64xf32> to vector<1x32xf32>
    %37 = vector.extract_strided_slice %26 {offsets = [0, 64], sizes = [1, 32], strides = [1, 1]} : vector<1x96xf32> to vector<1x32xf32>
    %38 = vector.extract_strided_slice %25 {offsets = [0, 64], sizes = [1, 32], strides = [1, 1]} : vector<1x96xf32> to vector<1x32xf32>
    %39 = arith.addf %38, %2 : vector<1x32xf32>
    %40 = arith.mulf %35, %39 : vector<1x32xf32>
    %41 = arith.addf %37, %40 : vector<1x32xf32>
    %42 = math.tanh %41 : vector<1x32xf32>
    %cst_19 = arith.constant 1.000000e+00 : f32
    %43 = vector.broadcast %cst_19 : f32 to vector<1x32xf32>
    %44 = arith.subf %43, %36 : vector<1x32xf32>
    %45 = arith.mulf %44, %42 : vector<1x32xf32>
    %46 = arith.mulf %36, %24 : vector<1x32xf32>
    %47 = arith.addf %45, %46 : vector<1x32xf32>
    %cst_20 = arith.constant dense<0.000000e+00> : vector<1x96xf32>
    %48 = tpu.matmul %47, %23, %cst_20 {dimension_numbers = #tpu.dot_dimension_numbers<[1], [0], [0], [1], [0, 0, 1, 1], [], []>} : vector<1x32xf32>, vector<32x96xf32>, vector<1x96xf32> -> vector<1x96xf32>
    %49 = vector.extract_strided_slice %14 {offsets = [1, 0], sizes = [1, 96], strides = [1, 1]} : vector<8x96xf32> to vector<1x96xf32>
    %50 = vector.extract_strided_slice %49 {offsets = [0, 0], sizes = [1, 64], strides = [1, 1]} : vector<1x96xf32> to vector<1x64xf32>
    %51 = vector.extract_strided_slice %48 {offsets = [0, 0], sizes = [1, 64], strides = [1, 1]} : vector<1x96xf32> to vector<1x64xf32>
    %52 = arith.addf %50, %51 : vector<1x64xf32>
    %53 = arith.negf %52 : vector<1x64xf32>
    %54 = math.exp %53 : vector<1x64xf32>
    %cst_21 = arith.constant 1.000000e+00 : f32
    %55 = vector.broadcast %cst_21 : f32 to vector<1x64xf32>
    %56 = arith.addf %55, %54 : vector<1x64xf32>
    %57 = arith.divf %55, %56 : vector<1x64xf32>
    %58 = vector.extract_strided_slice %57 {offsets = [0, 0], sizes = [1, 32], strides = [1, 1]} : vector<1x64xf32> to vector<1x32xf32>
    %59 = vector.extract_strided_slice %57 {offsets = [0, 32], sizes = [1, 32], strides = [1, 1]} : vector<1x64xf32> to vector<1x32xf32>
    %60 = vector.extract_strided_slice %49 {offsets = [0, 64], sizes = [1, 32], strides = [1, 1]} : vector<1x96xf32> to vector<1x32xf32>
    %61 = vector.extract_strided_slice %48 {offsets = [0, 64], sizes = [1, 32], strides = [1, 1]} : vector<1x96xf32> to vector<1x32xf32>
    %62 = arith.addf %61, %2 : vector<1x32xf32>
    %63 = arith.mulf %58, %62 : vector<1x32xf32>
    %64 = arith.addf %60, %63 : vector<1x32xf32>
    %65 = math.tanh %64 : vector<1x32xf32>
    %cst_22 = arith.constant 1.000000e+00 : f32
    %66 = vector.broadcast %cst_22 : f32 to vector<1x32xf32>
    %67 = arith.subf %66, %59 : vector<1x32xf32>
    %68 = arith.mulf %67, %65 : vector<1x32xf32>
    %69 = arith.mulf %59, %47 : vector<1x32xf32>
    %70 = arith.addf %68, %69 : vector<1x32xf32>
    %cst_23 = arith.constant dense<0.000000e+00> : vector<1x96xf32>
    %71 = tpu.matmul %70, %23, %cst_23 {dimension_numbers = #tpu.dot_dimension_numbers<[1], [0], [0], [1], [0, 0, 1, 1], [], []>} : vector<1x32xf32>, vector<32x96xf32>, vector<1x96xf32> -> vector<1x96xf32>
    %72 = vector.extract_strided_slice %14 {offsets = [2, 0], sizes = [1, 96], strides = [1, 1]} : vector<8x96xf32> to vector<1x96xf32>
    %73 = vector.extract_strided_slice %72 {offsets = [0, 0], sizes = [1, 64], strides = [1, 1]} : vector<1x96xf32> to vector<1x64xf32>
    %74 = vector.extract_strided_slice %71 {offsets = [0, 0], sizes = [1, 64], strides = [1, 1]} : vector<1x96xf32> to vector<1x64xf32>
    %75 = arith.addf %73, %74 : vector<1x64xf32>
    %76 = arith.negf %75 : vector<1x64xf32>
    %77 = math.exp %76 : vector<1x64xf32>
    %cst_24 = arith.constant 1.000000e+00 : f32
    %78 = vector.broadcast %cst_24 : f32 to vector<1x64xf32>
    %79 = arith.addf %78, %77 : vector<1x64xf32>
    %80 = arith.divf %78, %79 : vector<1x64xf32>
    %81 = vector.extract_strided_slice %80 {offsets = [0, 0], sizes = [1, 32], strides = [1, 1]} : vector<1x64xf32> to vector<1x32xf32>
    %82 = vector.extract_strided_slice %80 {offsets = [0, 32], sizes = [1, 32], strides = [1, 1]} : vector<1x64xf32> to vector<1x32xf32>
    %83 = vector.extract_strided_slice %72 {offsets = [0, 64], sizes = [1, 32], strides = [1, 1]} : vector<1x96xf32> to vector<1x32xf32>
    %84 = vector.extract_strided_slice %71 {offsets = [0, 64], sizes = [1, 32], strides = [1, 1]} : vector<1x96xf32> to vector<1x32xf32>
    %85 = arith.addf %84, %2 : vector<1x32xf32>
    %86 = arith.mulf %81, %85 : vector<1x32xf32>
    %87 = arith.addf %83, %86 : vector<1x32xf32>
    %88 = math.tanh %87 : vector<1x32xf32>
    %cst_25 = arith.constant 1.000000e+00 : f32
    %89 = vector.broadcast %cst_25 : f32 to vector<1x32xf32>
    %90 = arith.subf %89, %82 : vector<1x32xf32>
    %91 = arith.mulf %90, %88 : vector<1x32xf32>
    %92 = arith.mulf %82, %70 : vector<1x32xf32>
    %93 = arith.addf %91, %92 : vector<1x32xf32>
    %cst_26 = arith.constant dense<0.000000e+00> : vector<1x96xf32>
    %94 = tpu.matmul %93, %23, %cst_26 {dimension_numbers = #tpu.dot_dimension_numbers<[1], [0], [0], [1], [0, 0, 1, 1], [], []>} : vector<1x32xf32>, vector<32x96xf32>, vector<1x96xf32> -> vector<1x96xf32>
    %95 = vector.extract_strided_slice %14 {offsets = [3, 0], sizes = [1, 96], strides = [1, 1]} : vector<8x96xf32> to vector<1x96xf32>
    %96 = vector.extract_strided_slice %95 {offsets = [0, 0], sizes = [1, 64], strides = [1, 1]} : vector<1x96xf32> to vector<1x64xf32>
    %97 = vector.extract_strided_slice %94 {offsets = [0, 0], sizes = [1, 64], strides = [1, 1]} : vector<1x96xf32> to vector<1x64xf32>
    %98 = arith.addf %96, %97 : vector<1x64xf32>
    %99 = arith.negf %98 : vector<1x64xf32>
    %100 = math.exp %99 : vector<1x64xf32>
    %cst_27 = arith.constant 1.000000e+00 : f32
    %101 = vector.broadcast %cst_27 : f32 to vector<1x64xf32>
    %102 = arith.addf %101, %100 : vector<1x64xf32>
    %103 = arith.divf %101, %102 : vector<1x64xf32>
    %104 = vector.extract_strided_slice %103 {offsets = [0, 0], sizes = [1, 32], strides = [1, 1]} : vector<1x64xf32> to vector<1x32xf32>
    %105 = vector.extract_strided_slice %103 {offsets = [0, 32], sizes = [1, 32], strides = [1, 1]} : vector<1x64xf32> to vector<1x32xf32>
    %106 = vector.extract_strided_slice %95 {offsets = [0, 64], sizes = [1, 32], strides = [1, 1]} : vector<1x96xf32> to vector<1x32xf32>
    %107 = vector.extract_strided_slice %94 {offsets = [0, 64], sizes = [1, 32], strides = [1, 1]} : vector<1x96xf32> to vector<1x32xf32>
    %108 = arith.addf %107, %2 : vector<1x32xf32>
    %109 = arith.mulf %104, %108 : vector<1x32xf32>
    %110 = arith.addf %106, %109 : vector<1x32xf32>
    %111 = math.tanh %110 : vector<1x32xf32>
    %cst_28 = arith.constant 1.000000e+00 : f32
    %112 = vector.broadcast %cst_28 : f32 to vector<1x32xf32>
    %113 = arith.subf %112, %105 : vector<1x32xf32>
    %114 = arith.mulf %113, %111 : vector<1x32xf32>
    %115 = arith.mulf %105, %93 : vector<1x32xf32>
    %116 = arith.addf %114, %115 : vector<1x32xf32>
    %cst_29 = arith.constant dense<0.000000e+00> : vector<1x96xf32>
    %117 = tpu.matmul %116, %23, %cst_29 {dimension_numbers = #tpu.dot_dimension_numbers<[1], [0], [0], [1], [0, 0, 1, 1], [], []>} : vector<1x32xf32>, vector<32x96xf32>, vector<1x96xf32> -> vector<1x96xf32>
    %118 = vector.extract_strided_slice %14 {offsets = [4, 0], sizes = [1, 96], strides = [1, 1]} : vector<8x96xf32> to vector<1x96xf32>
    %119 = vector.extract_strided_slice %118 {offsets = [0, 0], sizes = [1, 64], strides = [1, 1]} : vector<1x96xf32> to vector<1x64xf32>
    %120 = vector.extract_strided_slice %117 {offsets = [0, 0], sizes = [1, 64], strides = [1, 1]} : vector<1x96xf32> to vector<1x64xf32>
    %121 = arith.addf %119, %120 : vector<1x64xf32>
    %122 = arith.negf %121 : vector<1x64xf32>
    %123 = math.exp %122 : vector<1x64xf32>
    %cst_30 = arith.constant 1.000000e+00 : f32
    %124 = vector.broadcast %cst_30 : f32 to vector<1x64xf32>
    %125 = arith.addf %124, %123 : vector<1x64xf32>
    %126 = arith.divf %124, %125 : vector<1x64xf32>
    %127 = vector.extract_strided_slice %126 {offsets = [0, 0], sizes = [1, 32], strides = [1, 1]} : vector<1x64xf32> to vector<1x32xf32>
    %128 = vector.extract_strided_slice %126 {offsets = [0, 32], sizes = [1, 32], strides = [1, 1]} : vector<1x64xf32> to vector<1x32xf32>
    %129 = vector.extract_strided_slice %118 {offsets = [0, 64], sizes = [1, 32], strides = [1, 1]} : vector<1x96xf32> to vector<1x32xf32>
    %130 = vector.extract_strided_slice %117 {offsets = [0, 64], sizes = [1, 32], strides = [1, 1]} : vector<1x96xf32> to vector<1x32xf32>
    %131 = arith.addf %130, %2 : vector<1x32xf32>
    %132 = arith.mulf %127, %131 : vector<1x32xf32>
    %133 = arith.addf %129, %132 : vector<1x32xf32>
    %134 = math.tanh %133 : vector<1x32xf32>
    %cst_31 = arith.constant 1.000000e+00 : f32
    %135 = vector.broadcast %cst_31 : f32 to vector<1x32xf32>
    %136 = arith.subf %135, %128 : vector<1x32xf32>
    %137 = arith.mulf %136, %134 : vector<1x32xf32>
    %138 = arith.mulf %128, %116 : vector<1x32xf32>
    %139 = arith.addf %137, %138 : vector<1x32xf32>
    %cst_32 = arith.constant dense<0.000000e+00> : vector<1x96xf32>
    %140 = tpu.matmul %139, %23, %cst_32 {dimension_numbers = #tpu.dot_dimension_numbers<[1], [0], [0], [1], [0, 0, 1, 1], [], []>} : vector<1x32xf32>, vector<32x96xf32>, vector<1x96xf32> -> vector<1x96xf32>
    %141 = vector.extract_strided_slice %14 {offsets = [5, 0], sizes = [1, 96], strides = [1, 1]} : vector<8x96xf32> to vector<1x96xf32>
    %142 = vector.extract_strided_slice %141 {offsets = [0, 0], sizes = [1, 64], strides = [1, 1]} : vector<1x96xf32> to vector<1x64xf32>
    %143 = vector.extract_strided_slice %140 {offsets = [0, 0], sizes = [1, 64], strides = [1, 1]} : vector<1x96xf32> to vector<1x64xf32>
    %144 = arith.addf %142, %143 : vector<1x64xf32>
    %145 = arith.negf %144 : vector<1x64xf32>
    %146 = math.exp %145 : vector<1x64xf32>
    %cst_33 = arith.constant 1.000000e+00 : f32
    %147 = vector.broadcast %cst_33 : f32 to vector<1x64xf32>
    %148 = arith.addf %147, %146 : vector<1x64xf32>
    %149 = arith.divf %147, %148 : vector<1x64xf32>
    %150 = vector.extract_strided_slice %149 {offsets = [0, 0], sizes = [1, 32], strides = [1, 1]} : vector<1x64xf32> to vector<1x32xf32>
    %151 = vector.extract_strided_slice %149 {offsets = [0, 32], sizes = [1, 32], strides = [1, 1]} : vector<1x64xf32> to vector<1x32xf32>
    %152 = vector.extract_strided_slice %141 {offsets = [0, 64], sizes = [1, 32], strides = [1, 1]} : vector<1x96xf32> to vector<1x32xf32>
    %153 = vector.extract_strided_slice %140 {offsets = [0, 64], sizes = [1, 32], strides = [1, 1]} : vector<1x96xf32> to vector<1x32xf32>
    %154 = arith.addf %153, %2 : vector<1x32xf32>
    %155 = arith.mulf %150, %154 : vector<1x32xf32>
    %156 = arith.addf %152, %155 : vector<1x32xf32>
    %157 = math.tanh %156 : vector<1x32xf32>
    %cst_34 = arith.constant 1.000000e+00 : f32
    %158 = vector.broadcast %cst_34 : f32 to vector<1x32xf32>
    %159 = arith.subf %158, %151 : vector<1x32xf32>
    %160 = arith.mulf %159, %157 : vector<1x32xf32>
    %161 = arith.mulf %151, %139 : vector<1x32xf32>
    %162 = arith.addf %160, %161 : vector<1x32xf32>
    %cst_35 = arith.constant dense<0.000000e+00> : vector<1x96xf32>
    %163 = tpu.matmul %162, %23, %cst_35 {dimension_numbers = #tpu.dot_dimension_numbers<[1], [0], [0], [1], [0, 0, 1, 1], [], []>} : vector<1x32xf32>, vector<32x96xf32>, vector<1x96xf32> -> vector<1x96xf32>
    %164 = vector.extract_strided_slice %14 {offsets = [6, 0], sizes = [1, 96], strides = [1, 1]} : vector<8x96xf32> to vector<1x96xf32>
    %165 = vector.extract_strided_slice %164 {offsets = [0, 0], sizes = [1, 64], strides = [1, 1]} : vector<1x96xf32> to vector<1x64xf32>
    %166 = vector.extract_strided_slice %163 {offsets = [0, 0], sizes = [1, 64], strides = [1, 1]} : vector<1x96xf32> to vector<1x64xf32>
    %167 = arith.addf %165, %166 : vector<1x64xf32>
    %168 = arith.negf %167 : vector<1x64xf32>
    %169 = math.exp %168 : vector<1x64xf32>
    %cst_36 = arith.constant 1.000000e+00 : f32
    %170 = vector.broadcast %cst_36 : f32 to vector<1x64xf32>
    %171 = arith.addf %170, %169 : vector<1x64xf32>
    %172 = arith.divf %170, %171 : vector<1x64xf32>
    %173 = vector.extract_strided_slice %172 {offsets = [0, 0], sizes = [1, 32], strides = [1, 1]} : vector<1x64xf32> to vector<1x32xf32>
    %174 = vector.extract_strided_slice %172 {offsets = [0, 32], sizes = [1, 32], strides = [1, 1]} : vector<1x64xf32> to vector<1x32xf32>
    %175 = vector.extract_strided_slice %164 {offsets = [0, 64], sizes = [1, 32], strides = [1, 1]} : vector<1x96xf32> to vector<1x32xf32>
    %176 = vector.extract_strided_slice %163 {offsets = [0, 64], sizes = [1, 32], strides = [1, 1]} : vector<1x96xf32> to vector<1x32xf32>
    %177 = arith.addf %176, %2 : vector<1x32xf32>
    %178 = arith.mulf %173, %177 : vector<1x32xf32>
    %179 = arith.addf %175, %178 : vector<1x32xf32>
    %180 = math.tanh %179 : vector<1x32xf32>
    %cst_37 = arith.constant 1.000000e+00 : f32
    %181 = vector.broadcast %cst_37 : f32 to vector<1x32xf32>
    %182 = arith.subf %181, %174 : vector<1x32xf32>
    %183 = arith.mulf %182, %180 : vector<1x32xf32>
    %184 = arith.mulf %174, %162 : vector<1x32xf32>
    %185 = arith.addf %183, %184 : vector<1x32xf32>
    %cst_38 = arith.constant dense<0.000000e+00> : vector<1x96xf32>
    %186 = tpu.matmul %185, %23, %cst_38 {dimension_numbers = #tpu.dot_dimension_numbers<[1], [0], [0], [1], [0, 0, 1, 1], [], []>} : vector<1x32xf32>, vector<32x96xf32>, vector<1x96xf32> -> vector<1x96xf32>
    %187 = vector.extract_strided_slice %14 {offsets = [7, 0], sizes = [1, 96], strides = [1, 1]} : vector<8x96xf32> to vector<1x96xf32>
    %188 = vector.extract_strided_slice %187 {offsets = [0, 0], sizes = [1, 64], strides = [1, 1]} : vector<1x96xf32> to vector<1x64xf32>
    %189 = vector.extract_strided_slice %186 {offsets = [0, 0], sizes = [1, 64], strides = [1, 1]} : vector<1x96xf32> to vector<1x64xf32>
    %190 = arith.addf %188, %189 : vector<1x64xf32>
    %191 = arith.negf %190 : vector<1x64xf32>
    %192 = math.exp %191 : vector<1x64xf32>
    %cst_39 = arith.constant 1.000000e+00 : f32
    %193 = vector.broadcast %cst_39 : f32 to vector<1x64xf32>
    %194 = arith.addf %193, %192 : vector<1x64xf32>
    %195 = arith.divf %193, %194 : vector<1x64xf32>
    %196 = vector.extract_strided_slice %195 {offsets = [0, 0], sizes = [1, 32], strides = [1, 1]} : vector<1x64xf32> to vector<1x32xf32>
    %197 = vector.extract_strided_slice %195 {offsets = [0, 32], sizes = [1, 32], strides = [1, 1]} : vector<1x64xf32> to vector<1x32xf32>
    %198 = vector.extract_strided_slice %187 {offsets = [0, 64], sizes = [1, 32], strides = [1, 1]} : vector<1x96xf32> to vector<1x32xf32>
    %199 = vector.extract_strided_slice %186 {offsets = [0, 64], sizes = [1, 32], strides = [1, 1]} : vector<1x96xf32> to vector<1x32xf32>
    %200 = arith.addf %199, %2 : vector<1x32xf32>
    %201 = arith.mulf %196, %200 : vector<1x32xf32>
    %202 = arith.addf %198, %201 : vector<1x32xf32>
    %203 = math.tanh %202 : vector<1x32xf32>
    %cst_40 = arith.constant 1.000000e+00 : f32
    %204 = vector.broadcast %cst_40 : f32 to vector<1x32xf32>
    %205 = arith.subf %204, %197 : vector<1x32xf32>
    %206 = arith.mulf %205, %203 : vector<1x32xf32>
    %207 = arith.mulf %197, %185 : vector<1x32xf32>
    %208 = arith.addf %206, %207 : vector<1x32xf32>
    %cst_41 = arith.constant 0.000000e+00 : f32
    %209 = vector.broadcast %cst_41 : f32 to vector<1x32xf32>
    %210 = arith.maximumf %208, %209 : vector<1x32xf32>
    %cst_42 = arith.constant dense<0.000000e+00> : vector<1x16xf32>
    %211 = tpu.matmul %210, %7, %cst_42 {dimension_numbers = #tpu.dot_dimension_numbers<[1], [0], [0], [1], [0, 0, 1, 1], [], []>} : vector<1x32xf32>, vector<32x16xf32>, vector<1x16xf32> -> vector<1x16xf32>
    %212 = arith.addf %211, %22 : vector<1x16xf32>
    %cst_43 = arith.constant 0.000000e+00 : f32
    %213 = vector.broadcast %cst_43 : f32 to vector<1x16xf32>
    %214 = arith.maximumf %212, %213 : vector<1x16xf32>
    %cst_44 = arith.constant dense<0.000000e+00> : vector<1x4xf32>
    %215 = tpu.matmul %214, %9, %cst_44 {dimension_numbers = #tpu.dot_dimension_numbers<[1], [0], [0], [1], [0, 0, 1, 1], [], []>} : vector<1x16xf32>, vector<16x4xf32>, vector<1x4xf32> -> vector<1x4xf32>
    %216 = arith.addf %215, %5 : vector<1x4xf32>
    %c0_45 = arith.constant 0 : index
    %c0_46 = arith.constant 0 : index
    %217 = vector.load %arg7[%c0_45, %c0_46] : memref<1x4xf32, #tpu.memory_space<vmem>>, vector<1x4xf32>
    tpu.vector_store %arg7[%c0_45, %c0_46], %216 {strides = array<i32>} : memref<1x4xf32, #tpu.memory_space<vmem>>, vector<1x4xf32>,
    return
  }
}

</mosaic_0001>

<llo_original>
// kernel: multi_model_forward.1
$region0: #{multi_model_forward.1}
  #allocation0 [shape = 'u32[]', space=smem, size = 0x4, offset = 0x4, fixed_abs, tag = 'smem constant byte address 0x4 - core index']
  #allocation1 [shape = 'u32[72,128]{1,0:T(1,128)}', space=vmem, size = 0x9000, scoped, tag = 'internal scratch']
  %s0 = inlined_call_operand.vmem [shape: f32[8,128], index: 0, kind: input, shape index: {}]
  %s1 = inlined_call_operand.vmem [shape: f32[1,768], index: 1, kind: input, shape index: {}]
  %s2 = inlined_call_operand.vmem [shape: f32[128,96], index: 2, kind: input, shape index: {}]
  %s3 = inlined_call_operand.vmem [shape: f32[32,96], index: 3, kind: input, shape index: {}]
  %s4 = inlined_call_operand.vmem [shape: f32[768,32], index: 4, kind: input, shape index: {}]
  %s5 = inlined_call_operand.vmem [shape: f32[5,96], index: 5, kind: input, shape index: {}]
  %s6 = inlined_call_operand.vmem [shape: f32[80,16], index: 6, kind: input, shape index: {}]
  %s7 = inlined_call_operand.hbm [shape: f32[1,4], index: 7, kind: output, shape index: {}]
  %s8 = sld [smem:[#allocation0]]
  $region38: #{multi_model_forward.1} parent=0
    _
  %s10 = ssub.s32 1, %s8
  %s11 = scalar_select 0, %s10, %s8
  $region1: #{multi_model_forward.1} parent=0
    #allocation2 [shape = 'u8[512]{0}', space=vmem, size = 0x400, scoped, tag = 'output window, operand 0, single buffered']
    #allocation3 [shape = 's32[1]{0}', space=sflag, size = 0x4, scoped, tag = 'scoped memory for multi_model_forward.1']
    %12 = vsyncpa [#allocation3], 0
    // Predicated region
    $region2: #{multi_model_forward.1} parent=1 // pred_check
      _
    $region3: #{multi_model_forward.1} parent=1 // pred_check_branch
      %14 = sbr.rel (0) target = $region5
    $region4: #{multi_model_forward.1} parent=1 // pred_region
      _
    $region5: #{multi_model_forward.1} parent=1 // pred_fallthru
      _
    // Predicated region
    $region6: #{multi_model_forward.1} parent=1 // pred_check
      _
    $region7: #{multi_model_forward.1} parent=1 // pred_check_branch
      %16 = sbr.rel (0) target = $region9
    $region8: #{multi_model_forward.1} parent=1 // pred_region
      _
    $region9: #{multi_model_forward.1} parent=1 // pred_fallthru
      _
    // Predicated region
    $region10: #{multi_model_forward.1} parent=1 // pred_check
      _
    $region11: #{multi_model_forward.1} parent=1 // pred_check_branch
      %18 = sbr.rel (0) target = $region13
    $region12: #{multi_model_forward.1} parent=1 // pred_region
      _
    $region13: #{multi_model_forward.1} parent=1 // pred_fallthru
      _
    // Predicated region
    $region14: #{multi_model_forward.1} parent=1 // pred_check
      _
    $region15: #{multi_model_forward.1} parent=1 // pred_check_branch
      %20 = sbr.rel (0) target = $region17
    $region16: #{multi_model_forward.1} parent=1 // pred_region
      _
    $region17: #{multi_model_forward.1} parent=1 // pred_fallthru
      _
    // Predicated region
    $region18: #{multi_model_forward.1} parent=1 // pred_check
      _
    $region19: #{multi_model_forward.1} parent=1 // pred_check_branch
      %22 = sbr.rel (0) target = $region21
    $region20: #{multi_model_forward.1} parent=1 // pred_region
      _
    $region21: #{multi_model_forward.1} parent=1 // pred_fallthru
      _
    // Predicated region
    $region22: #{multi_model_forward.1} parent=1 // pred_check
      _
    $region23: #{multi_model_forward.1} parent=1 // pred_check_branch
      %24 = sbr.rel (0) target = $region25
    $region24: #{multi_model_forward.1} parent=1 // pred_region
      _
    $region25: #{multi_model_forward.1} parent=1 // pred_fallthru
      _
    // Predicated region
    $region26: #{multi_model_forward.1} parent=1 // pred_check
      _
    $region27: #{multi_model_forward.1} parent=1 // pred_check_branch
      %26 = sbr.rel (0) target = $region29
    $region28: #{multi_model_forward.1} parent=1 // pred_region
      _
    $region29: #{multi_model_forward.1} parent=1 // pred_fallthru
      _
    %v27 = vld [vmem:[%s5] sm:$0x1f]
    %v28 = vld [vmem:[%s6] sm:$0xff]
    %v29 = vld [vmem:[%s6 + $0x8] sm:$0xff]
    %v30 = vld [vmem:[%s6 + $0x10] sm:$0xff]
    %v31 = vld [vmem:[%s6 + $0x18] sm:$0xff]
    %v32 = vld [vmem:[%s6 + $0x20] sm:$0xff]
    %v33 = vld [vmem:[%s6 + $0x28] sm:$0xff]
    %v34 = vld [vmem:[%s6 + $0x30] sm:$0xff]
    %v35 = vld [vmem:[%s6 + $0x38] sm:$0xff]
    %v36 = vld [vmem:[%s6 + $0x40] sm:$0xff]
    %v37 = vld [vmem:[%s6 + $0x48] sm:$0xff]
    %v38 = vld [vmem:[%s0] sm:$0xff]
    %v39 = vld [vmem:[%s2] sm:$0xff]
    %v40 = vld [vmem:[%s2 + $0x8] sm:$0xff]
    %v41 = vld [vmem:[%s2 + $0x10] sm:$0xff]
    %v42 = vld [vmem:[%s2 + $0x18] sm:$0xff]
    %v43 = vld [vmem:[%s2 + $0x20] sm:$0xff]
    %v44 = vld [vmem:[%s2 + $0x28] sm:$0xff]
    %v45 = vld [vmem:[%s2 + $0x30] sm:$0xff]
    %v46 = vld [vmem:[%s2 + $0x38] sm:$0xff]
    %v47 = vld [vmem:[%s2 + $0x40] sm:$0xff]
    %v48 = vld [vmem:[%s2 + $0x48] sm:$0xff]
    %v49 = vld [vmem:[%s2 + $0x50] sm:$0xff]
    %v50 = vld [vmem:[%s2 + $0x58] sm:$0xff]
    %v51 = vld [vmem:[%s2 + $0x60] sm:$0xff]
    %v52 = vld [vmem:[%s2 + $0x68] sm:$0xff]
    %v53 = vld [vmem:[%s2 + $0x70] sm:$0xff]
    %v54 = vld [vmem:[%s2 + $0x78] sm:$0xff]
    %v55 = vperm.slane %v27, 0
    %56 = vmatpush.msra.mxu0 %v54
    %57 = vmatpush.msra.mxu0 %v53
    %58 = vmatpush.msra.mxu0 %v52
    %59 = vmatpush.msra.mxu0 %v51
    %60 = vmatpush.msra.mxu0 %v50
    %61 = vmatpush.msra.mxu0 %v49
    %62 = vmatpush.msra.mxu0 %v48
    %63 = vmatpush.msra.mxu0 %v47
    %64 = vmatpush.msra.mxu0 %v46
    %65 = vmatpush.msra.mxu0 %v45
    %66 = vmatpush.msra.mxu0 %v44
    %67 = vmatpush.msra.mxu0 %v43
    %68 = vmatpush.msra.mxu0 %v42
    %69 = vmatpush.msra.mxu0 %v41
    %70 = vmatpush.msra.mxu0 %v40
    %71 = vmatpush.msra.mxu0 %v39
    %72 = vmatmul.f32.gmra.mxu0 %v38
    %v73 = vpop.f32.mrf.mxu0
    %v74 = vadd.f32 %v55, %v73
    %75 = vdwg.mxu0
    %v76 = vld [vmem:[%s1] sm:$0x3f]
    %v77 = vld [vmem:[%s4] sm:$0xff]
    %v78 = vld [vmem:[%s4 + $0x8] sm:$0xff]
    %v79 = vld [vmem:[%s4 + $0x10] sm:$0xff]
    %v80 = vld [vmem:[%s4 + $0x18] sm:$0xff]
    %v81 = vld [vmem:[%s4 + $0x20] sm:$0xff]
    %v82 = vld [vmem:[%s4 + $0x28] sm:$0xff]
    %v83 = vld [vmem:[%s4 + $0x30] sm:$0xff]
    %v84 = vld [vmem:[%s4 + $0x38] sm:$0xff]
    %v85 = vld [vmem:[%s4 + $0x40] sm:$0xff]
    %v86 = vld [vmem:[%s4 + $0x48] sm:$0xff]
    %v87 = vld [vmem:[%s4 + $0x50] sm:$0xff]
    %v88 = vld [vmem:[%s4 + $0x58] sm:$0xff]
    %v89 = vld [vmem:[%s4 + $0x60] sm:$0xff]
    %v90 = vld [vmem:[%s4 + $0x68] sm:$0xff]
    %v91 = vld [vmem:[%s4 + $0x70] sm:$0xff]
    %v92 = vld [vmem:[%s4 + $0x78] sm:$0xff]
    %v93 = vld [vmem:[%s4 + $0x80] sm:$0xff]
    %v94 = vld [vmem:[%s4 + $0x88] sm:$0xff]
    %v95 = vld [vmem:[%s4 + $0x90] sm:$0xff]
    %v96 = vld [vmem:[%s4 + $0x98] sm:$0xff]
    %v97 = vld [vmem:[%s4 + $0xa0] sm:$0xff]
    %v98 = vld [vmem:[%s4 + $0xa8] sm:$0xff]
    %v99 = vld [vmem:[%s4 + $0xb0] sm:$0xff]
    %v100 = vld [vmem:[%s4 + $0xb8] sm:$0xff]
    %v101 = vld [vmem:[%s4 + $0xc0] sm:$0xff]
    %v102 = vld [vmem:[%s4 + $0xc8] sm:$0xff]
    %v103 = vld [vmem:[%s4 + $0xd0] sm:$0xff]
    %v104 = vld [vmem:[%s4 + $0xd8] sm:$0xff]
    %v105 = vld [vmem:[%s4 + $0xe0] sm:$0xff]
    %v106 = vld [vmem:[%s4 + $0xe8] sm:$0xff]
    %v107 = vld [vmem:[%s4 + $0xf0] sm:$0xff]
    %v108 = vld [vmem:[%s4 + $0xf8] sm:$0xff]
    %v109 = vld [vmem:[%s4 + $0x100] sm:$0xff]
    %v110 = vld [vmem:[%s4 + $0x108] sm:$0xff]
    %v111 = vld [vmem:[%s4 + $0x110] sm:$0xff]
    %v112 = vld [vmem:[%s4 + $0x118] sm:$0xff]
    %v113 = vld [vmem:[%s4 + $0x120] sm:$0xff]
    %v114 = vld [vmem:[%s4 + $0x128] sm:$0xff]
    %v115 = vld [vmem:[%s4 + $0x130] sm:$0xff]
    %v116 = vld [vmem:[%s4 + $0x138] sm:$0xff]
    %v117 = vld [vmem:[%s4 + $0x140] sm:$0xff]
    %v118 = vld [vmem:[%s4 + $0x148] sm:$0xff]
    %v119 = vld [vmem:[%s4 + $0x150] sm:$0xff]
    %v120 = vld [vmem:[%s4 + $0x158] sm:$0xff]
    %v121 = vld [vmem:[%s4 + $0x160] sm:$0xff]
    %v122 = vld [vmem:[%s4 + $0x168] sm:$0xff]
    %v123 = vld [vmem:[%s4 + $0x170] sm:$0xff]
    %v124 = vld [vmem:[%s4 + $0x178] sm:$0xff]
    %v125 = vld [vmem:[%s4 + $0x180] sm:$0xff]
    %v126 = vld [vmem:[%s4 + $0x188] sm:$0xff]
    %v127 = vld [vmem:[%s4 + $0x190] sm:$0xff]
    %v128 = vld [vmem:[%s4 + $0x198] sm:$0xff]
    %v129 = vld [vmem:[%s4 + $0x1a0] sm:$0xff]
    %v130 = vld [vmem:[%s4 + $0x1a8] sm:$0xff]
    %v131 = vld [vmem:[%s4 + $0x1b0] sm:$0xff]
    %v132 = vld [vmem:[%s4 + $0x1b8] sm:$0xff]
    %v133 = vld [vmem:[%s4 + $0x1c0] sm:$0xff]
    %v134 = vld [vmem:[%s4 + $0x1c8] sm:$0xff]
    %v135 = vld [vmem:[%s4 + $0x1d0] sm:$0xff]
    %v136 = vld [vmem:[%s4 + $0x1d8] sm:$0xff]
    %v137 = vld [vmem:[%s4 + $0x1e0] sm:$0xff]
    %v138 = vld [vmem:[%s4 + $0x1e8] sm:$0xff]
    %v139 = vld [vmem:[%s4 + $0x1f0] sm:$0xff]
    %v140 = vld [vmem:[%s4 + $0x1f8] sm:$0xff]
    %v141 = vld [vmem:[%s4 + $0x200] sm:$0xff]
    %v142 = vld [vmem:[%s4 + $0x208] sm:$0xff]
    %v143 = vld [vmem:[%s4 + $0x210] sm:$0xff]
    %v144 = vld [vmem:[%s4 + $0x218] sm:$0xff]
    %v145 = vld [vmem:[%s4 + $0x220] sm:$0xff]
    %v146 = vld [vmem:[%s4 + $0x228] sm:$0xff]
    %v147 = vld [vmem:[%s4 + $0x230] sm:$0xff]
    %v148 = vld [vmem:[%s4 + $0x238] sm:$0xff]
    %v149 = vld [vmem:[%s4 + $0x240] sm:$0xff]
    %v150 = vld [vmem:[%s4 + $0x248] sm:$0xff]
    %v151 = vld [vmem:[%s4 + $0x250] sm:$0xff]
    %v152 = vld [vmem:[%s4 + $0x258] sm:$0xff]
    %v153 = vld [vmem:[%s4 + $0x260] sm:$0xff]
    %v154 = vld [vmem:[%s4 + $0x268] sm:$0xff]
    %v155 = vld [vmem:[%s4 + $0x270] sm:$0xff]
    %v156 = vld [vmem:[%s4 + $0x278] sm:$0xff]
    %v157 = vld [vmem:[%s4 + $0x280] sm:$0xff]
    %v158 = vld [vmem:[%s4 + $0x288] sm:$0xff]
    %v159 = vld [vmem:[%s4 + $0x290] sm:$0xff]
    %v160 = vld [vmem:[%s4 + $0x298] sm:$0xff]
    %v161 = vld [vmem:[%s4 + $0x2a0] sm:$0xff]
    %v162 = vld [vmem:[%s4 + $0x2a8] sm:$0xff]
    %v163 = vld [vmem:[%s4 + $0x2b0] sm:$0xff]
    %v164 = vld [vmem:[%s4 + $0x2b8] sm:$0xff]
    %v165 = vld [vmem:[%s4 + $0x2c0] sm:$0xff]
    %v166 = vld [vmem:[%s4 + $0x2c8] sm:$0xff]
    %v167 = vld [vmem:[%s4 + $0x2d0] sm:$0xff]
    %v168 = vld [vmem:[%s4 + $0x2d8] sm:$0xff]
    %v169 = vld [vmem:[%s4 + $0x2e0] sm:$0xff]
    %v170 = vld [vmem:[%s4 + $0x2e8] sm:$0xff]
    %v171 = vld [vmem:[%s4 + $0x2f0] sm:$0xff]
    %v172 = vld [vmem:[%s4 + $0x2f8] sm:$0xff]
    %v174 = vperm.slane %v76, 0
    %v175 = vperm.slane %v76, 1
    %v176 = vperm.slane %v76, 2
    %v177 = vperm.slane %v76, 3
    %v178 = vperm.slane %v76, 4
    %v179 = vperm.slane %v76, 5
    %v187 = vrot.slane %v27, 2
    %189 = vmatpush.msra.mxu0 %v92
    %190 = vmatpush.msra.mxu0 %v91
    %191 = vmatpush.msra.mxu0 %v90
    %192 = vmatpush.msra.mxu0 %v89
    %193 = vmatpush.msra.mxu0 %v88
    %194 = vmatpush.msra.mxu0 %v87
    %195 = vmatpush.msra.mxu0 %v86
    %196 = vmatpush.msra.mxu0 %v85
    %197 = vmatpush.msra.mxu0 %v84
    %198 = vmatpush.msra.mxu0 %v83
    %199 = vmatpush.msra.mxu0 %v82
    %200 = vmatpush.msra.mxu0 %v81
    %201 = vmatpush.msra.mxu0 %v80
    %202 = vmatpush.msra.mxu0 %v79
    %203 = vmatpush.msra.mxu0 %v78
    %204 = vmatpush.msra.mxu0 %v77
    %205 = vmatmul.f32.gmra.mxu0 %v174
    %v206 = vpop.f32.mrf.mxu0
    %v207 = vadd.f32 %v187, %v206
    %208 = vdwg.mxu0
    %209 = vmatpush.msra.mxu0 %v108
    %210 = vmatpush.msra.mxu0 %v107
    %211 = vmatpush.msra.mxu0 %v106
    %212 = vmatpush.msra.mxu0 %v105
    %213 = vmatpush.msra.mxu0 %v104
    %214 = vmatpush.msra.mxu0 %v103
    %215 = vmatpush.msra.mxu0 %v102
    %216 = vmatpush.msra.mxu0 %v101
    %217 = vmatpush.msra.mxu0 %v100
    %218 = vmatpush.msra.mxu0 %v99
    %219 = vmatpush.msra.mxu0 %v98
    %220 = vmatpush.msra.mxu0 %v97
    %221 = vmatpush.msra.mxu0 %v96
    %222 = vmatpush.msra.mxu0 %v95
    %223 = vmatpush.msra.mxu0 %v94
    %224 = vmatpush.msra.mxu0 %v93
    %225 = vmatmul.f32.gmra.mxu0 %v175
    %v226 = vpop.f32.mrf.mxu0
    %v227 = vadd.f32 %v207, %v226
    %228 = vdwg.mxu0
    %229 = vmatpush.msra.mxu0 %v124
    %230 = vmatpush.msra.mxu0 %v123
    %231 = vmatpush.msra.mxu0 %v122
    %232 = vmatpush.msra.mxu0 %v121
    %233 = vmatpush.msra.mxu0 %v120
    %234 = vmatpush.msra.mxu0 %v119
    %235 = vmatpush.msra.mxu0 %v118
    %236 = vmatpush.msra.mxu0 %v117
    %237 = vmatpush.msra.mxu0 %v116
    %238 = vmatpush.msra.mxu0 %v115
    %239 = vmatpush.msra.mxu0 %v114
    %240 = vmatpush.msra.mxu0 %v113
    %241 = vmatpush.msra.mxu0 %v112
    %242 = vmatpush.msra.mxu0 %v111
    %243 = vmatpush.msra.mxu0 %v110
    %244 = vmatpush.msra.mxu0 %v109
    %245 = vmatmul.f32.gmra.mxu0 %v176
    %v246 = vpop.f32.mrf.mxu0
    %v247 = vadd.f32 %v227, %v246
    %248 = vdwg.mxu0
    %249 = vmatpush.msra.mxu0 %v140
    %250 = vmatpush.msra.mxu0 %v139
    %251 = vmatpush.msra.mxu0 %v138
    %252 = vmatpush.msra.mxu0 %v137
    %253 = vmatpush.msra.mxu0 %v136
    %254 = vmatpush.msra.mxu0 %v135
    %255 = vmatpush.msra.mxu0 %v134
    %256 = vmatpush.msra.mxu0 %v133
    %257 = vmatpush.msra.mxu0 %v132
    %258 = vmatpush.msra.mxu0 %v131
    %259 = vmatpush.msra.mxu0 %v130
    %260 = vmatpush.msra.mxu0 %v129
    %261 = vmatpush.msra.mxu0 %v128
    %262 = vmatpush.msra.mxu0 %v127
    %263 = vmatpush.msra.mxu0 %v126
    %264 = vmatpush.msra.mxu0 %v125
    %265 = vmatmul.f32.gmra.mxu0 %v177
    %v266 = vpop.f32.mrf.mxu0
    %v267 = vadd.f32 %v247, %v266
    %268 = vdwg.mxu0
    %269 = vmatpush.msra.mxu0 %v156
    %270 = vmatpush.msra.mxu0 %v155
    %271 = vmatpush.msra.mxu0 %v154
    %272 = vmatpush.msra.mxu0 %v153
    %273 = vmatpush.msra.mxu0 %v152
    %274 = vmatpush.msra.mxu0 %v151
    %275 = vmatpush.msra.mxu0 %v150
    %276 = vmatpush.msra.mxu0 %v149
    %277 = vmatpush.msra.mxu0 %v148
    %278 = vmatpush.msra.mxu0 %v147
    %279 = vmatpush.msra.mxu0 %v146
    %280 = vmatpush.msra.mxu0 %v145
    %281 = vmatpush.msra.mxu0 %v144
    %282 = vmatpush.msra.mxu0 %v143
    %283 = vmatpush.msra.mxu0 %v142
    %284 = vmatpush.msra.mxu0 %v141
    %285 = vmatmul.f32.gmra.mxu0 %v178
    %v286 = vpop.f32.mrf.mxu0
    %v287 = vadd.f32 %v267, %v286
    %288 = vdwg.mxu0
    %289 = vmatpush.msra.mxu0 %v172
    %290 = vmatpush.msra.mxu0 %v171
    %291 = vmatpush.msra.mxu0 %v170
    %292 = vmatpush.msra.mxu0 %v169
    %293 = vmatpush.msra.mxu0 %v168
    %294 = vmatpush.msra.mxu0 %v167
    %295 = vmatpush.msra.mxu0 %v166
    %296 = vmatpush.msra.mxu0 %v165
    %297 = vmatpush.msra.mxu0 %v164
    %298 = vmatpush.msra.mxu0 %v163
    %299 = vmatpush.msra.mxu0 %v162
    %300 = vmatpush.msra.mxu0 %v161
    %301 = vmatpush.msra.mxu0 %v160
    %302 = vmatpush.msra.mxu0 %v159
    %303 = vmatpush.msra.mxu0 %v158
    %304 = vmatpush.msra.mxu0 %v157
    %305 = vmatmul.f32.gmra.mxu0 %v179
    %v306 = vpop.f32.mrf.mxu0
    %v307 = vadd.f32 %v287, %v306
    %308 = vdwg.mxu0
    %v309 = vmax.f32 %v307, 0.0
    %v310 = vrot.slane %v27, 3
    %vm312 = vcmask 261120
    %v314 = vsel %vm312, %v309, 0
    %316 = vmatpush.msra.mxu0 0.0
    %317 = vmatpush.msra.mxu0 0.0
    %318 = vmatpush.msra.mxu0 0.0
    %319 = vmatpush.msra.mxu0 0.0
    %320 = vmatpush.msra.mxu0 0.0
    %321 = vmatpush.msra.mxu0 0.0
    %322 = vmatpush.msra.mxu0 0.0
    %323 = vmatpush.msra.mxu0 0.0
    %324 = vmatpush.msra.mxu0 0.0
    %325 = vmatpush.msra.mxu0 0.0
    %326 = vmatpush.msra.mxu0 0.0
    %327 = vmatpush.msra.mxu0 0.0
    %328 = vmatpush.msra.mxu0 %v35
    %329 = vmatpush.msra.mxu0 %v34
    %330 = vmatpush.msra.mxu0 %v33
    %331 = vmatpush.msra.mxu0 %v32
    %332 = vmatmul.f32.gmra.mxu0 %v314
    %v333 = vpop.f32.mrf.mxu0
    %v334 = vadd.f32 %v310, %v333
    %335 = vdwg.mxu0
    %v336 = vld [vmem:[%s3] sm:$0xff]
    %v337 = vld [vmem:[%s3 + $0x8] sm:$0xff]
    %v338 = vld [vmem:[%s3 + $0x10] sm:$0xff]
    %v339 = vld [vmem:[%s3 + $0x18] sm:$0xff]
    %v341 = vsel %vm312, 0.0, 0
    %343 = vmatpush.msra.mxu0 0.0
    %344 = vmatpush.msra.mxu0 0.0
    %345 = vmatpush.msra.mxu0 0.0
    %346 = vmatpush.msra.mxu0 0.0
    %347 = vmatpush.msra.mxu0 0.0
    %348 = vmatpush.msra.mxu0 0.0
    %349 = vmatpush.msra.mxu0 0.0
    %350 = vmatpush.msra.mxu0 0.0
    %351 = vmatpush.msra.mxu0 0.0
    %352 = vmatpush.msra.mxu0 0.0
    %353 = vmatpush.msra.mxu0 0.0
    %354 = vmatpush.msra.mxu0 0.0
    %355 = vmatpush.msra.mxu0 %v339
    %356 = vmatpush.msra.mxu0 %v338
    %357 = vmatpush.msra.mxu0 %v337
    %358 = vmatpush.msra.mxu0 %v336
    %359 = vmatmul.f32.gmra.mxu0 %v341
    %v360 = vpop.f32.mrf.mxu0
    %v361 = vadd.f32 0.0, %v360
    %362 = vdwg.mxu0
    %v363 = vadd.f32 %v74, %v361
    %v364 = vxor.u32 %v363, 2147483648
    %v365 = vmul.f32 %v364, 1.442695
    %v366 = vpow.pop %v365
    %v367 = vadd.f32 %v366, 1.0
    %v368 = vrcp.pop %v367
    %v369 = vmul.f32 %v367, %v368
    %v370 = vsub.f32 1.0, %v369
    %v371 = vmul.f32 %v368, %v370
    %v372 = vadd.f32 %v368, %v371
    %vm373 = vweird.f32 %v367
    %vm374 = vweird.f32 %v368
    %vm375 = vmor %vm373, %vm374
    %v376 = vsel %vm375, %v368, %v372
    %v377 = vand.u32 2147483647, %v367
    %vm378 = vcmp.eq.f32.partialorder %v377, 8.507059e+37
    %v379 = vand.u32 %v367, 2147483648
    %v380 = vor.u32 1.1754944e-38, %v379
    %v381 = vsel %vm378, %v380, %v376
    %v382 = vmul.f32 1.0, %v381
    %v383 = vrot.slane %v27, 1
    %384 = vrot.lane.b32.xlu0 %v383, 64
    %v385 = vpop.permute.xlu0 %384
    %v387 = vadd.f32 %v361, %v385
    %389 = vrot.lane.b32.xlu0 %v387, 64
    %v390 = vpop.permute.xlu0 %389
    %v392 = vmul.f32 %v382, %v390
    %394 = vrot.lane.b32.xlu0 %v392, 64
    %v395 = vpop.permute.xlu0 %394
    %v397 = vadd.f32 %v74, %v395
    %v398 = vtanh.pop %v397
    %v399 = vsub.f32 1.0, %v382
    %401 = vrot.lane.b32.xlu0 %v398, 96
    %v402 = vpop.permute.xlu0 %401
    %v404 = vmul.f32 %v399, %v402
    %v405 = vmul.f32 %v382, 0.0
    %v406 = vadd.f32 %v404, %v405
    %408 = vrot.lane.b32.xlu0 %v406, 96
    %v409 = vpop.permute.xlu0 %408
    %v410 = vsel %vm312, %v409, 0
    %412 = vmatpush.msra.mxu0 0.0
    %413 = vmatpush.msra.mxu0 0.0
    %414 = vmatpush.msra.mxu0 0.0
    %415 = vmatpush.msra.mxu0 0.0
    %416 = vmatpush.msra.mxu0 0.0
    %417 = vmatpush.msra.mxu0 0.0
    %418 = vmatpush.msra.mxu0 0.0
    %419 = vmatpush.msra.mxu0 0.0
    %420 = vmatpush.msra.mxu0 0.0
    %421 = vmatpush.msra.mxu0 0.0
    %422 = vmatpush.msra.mxu0 0.0
    %423 = vmatpush.msra.mxu0 0.0
    %424 = vmatpush.msra.mxu0 %v339
    %425 = vmatpush.msra.mxu0 %v338
    %426 = vmatpush.msra.mxu0 %v337
    %427 = vmatpush.msra.mxu0 %v336
    %428 = vmatmul.f32.gmra.mxu0 %v410
    %v429 = vpop.f32.mrf.mxu0
    %v430 = vadd.f32 0.0, %v429
    %431 = vdwg.mxu0
    %v433 = vrot.slane %v430, 7
    %v435 = vadd.f32 %v74, %v433
    %v436 = vxor.u32 %v435, 2147483648
    %v437 = vmul.f32 %v436, 1.442695
    %v438 = vpow.pop %v437
    %v439 = vadd.f32 %v438, 1.0
    %v440 = vrcp.pop %v439
    %v441 = vmul.f32 %v439, %v440
    %v442 = vsub.f32 1.0, %v441
    %v443 = vmul.f32 %v440, %v442
    %v444 = vadd.f32 %v440, %v443
    %vm445 = vweird.f32 %v439
    %vm446 = vweird.f32 %v440
    %vm447 = vmor %vm445, %vm446
    %v448 = vsel %vm447, %v440, %v444
    %v449 = vand.u32 2147483647, %v439
    %vm450 = vcmp.eq.f32.partialorder %v449, 8.507059e+37
    %v451 = vand.u32 %v439, 2147483648
    %v452 = vor.u32 1.1754944e-38, %v451
    %v453 = vsel %vm450, %v452, %v448
    %v454 = vmul.f32 1.0, %v453
    %v455 = vadd.f32 %v430, %v385
    %v457 = vrot.slane %v455, 7
    %458 = vrot.lane.b32.xlu0 %v457, 64
    %v459 = vpop.permute.xlu0 %458
    %v461 = vmul.f32 %v454, %v459
    %463 = vrot.lane.b32.xlu0 %v461, 64
    %v464 = vpop.permute.xlu0 %463
    %v466 = vadd.f32 %v74, %v464
    %v467 = vtanh.pop %v466
    %v468 = vsub.f32 1.0, %v454
    %470 = vrot.lane.b32.xlu0 %v467, 96
    %v471 = vpop.permute.xlu0 %470
    %v473 = vmul.f32 %v468, %v471
    %v474 = vrot.slane %v406, 7
    %v476 = vmul.f32 %v454, %v474
    %v477 = vadd.f32 %v473, %v476
    %v479 = vrot.slane %v477, 1
    %480 = vrot.lane.b32.xlu0 %v479, 96
    %v481 = vpop.permute.xlu0 %480
    %v482 = vsel %vm312, %v481, 0
    %484 = vmatpush.msra.mxu0 0.0
    %485 = vmatpush.msra.mxu0 0.0
    %486 = vmatpush.msra.mxu0 0.0
    %487 = vmatpush.msra.mxu0 0.0
    %488 = vmatpush.msra.mxu0 0.0
    %489 = vmatpush.msra.mxu0 0.0
    %490 = vmatpush.msra.mxu0 0.0
    %491 = vmatpush.msra.mxu0 0.0
    %492 = vmatpush.msra.mxu0 0.0
    %493 = vmatpush.msra.mxu0 0.0
    %494 = vmatpush.msra.mxu0 0.0
    %495 = vmatpush.msra.mxu0 0.0
    %496 = vmatpush.msra.mxu0 %v339
    %497 = vmatpush.msra.mxu0 %v338
    %498 = vmatpush.msra.mxu0 %v337
    %499 = vmatpush.msra.mxu0 %v336
    %500 = vmatmul.f32.gmra.mxu0 %v482
    %v501 = vpop.f32.mrf.mxu0
    %v502 = vadd.f32 0.0, %v501
    %503 = vdwg.mxu0
    %v505 = vrot.slane %v502, 6
    %v507 = vadd.f32 %v74, %v505
    %v508 = vxor.u32 %v507, 2147483648
    %v509 = vmul.f32 %v508, 1.442695
    %v510 = vpow.pop %v509
    %v511 = vadd.f32 %v510, 1.0
    %v512 = vrcp.pop %v511
    %v513 = vmul.f32 %v511, %v512
    %v514 = vsub.f32 1.0, %v513
    %v515 = vmul.f32 %v512, %v514
    %v516 = vadd.f32 %v512, %v515
    %vm517 = vweird.f32 %v511
    %vm518 = vweird.f32 %v512
    %vm519 = vmor %vm517, %vm518
    %v520 = vsel %vm519, %v512, %v516
    %v521 = vand.u32 2147483647, %v511
    %vm522 = vcmp.eq.f32.partialorder %v521, 8.507059e+37
    %v523 = vand.u32 %v511, 2147483648
    %v524 = vor.u32 1.1754944e-38, %v523
    %v525 = vsel %vm522, %v524, %v520
    %v526 = vmul.f32 1.0, %v525
    %v527 = vadd.f32 %v502, %v385
    %v529 = vrot.slane %v527, 6
    %530 = vrot.lane.b32.xlu0 %v529, 64
    %v531 = vpop.permute.xlu0 %530
    %v533 = vmul.f32 %v526, %v531
    %535 = vrot.lane.b32.xlu0 %v533, 64
    %v536 = vpop.permute.xlu0 %535
    %v538 = vadd.f32 %v74, %v536
    %v539 = vtanh.pop %v538
    %v540 = vsub.f32 1.0, %v526
    %542 = vrot.lane.b32.xlu0 %v539, 96
    %v543 = vpop.permute.xlu0 %542
    %v545 = vmul.f32 %v540, %v543
    %v546 = vrot.slane %v477, 7
    %v548 = vmul.f32 %v526, %v546
    %v549 = vadd.f32 %v545, %v548
    %v551 = vrot.slane %v549, 2
    %552 = vrot.lane.b32.xlu0 %v551, 96
    %v553 = vpop.permute.xlu0 %552
    %v554 = vsel %vm312, %v553, 0
    %556 = vmatpush.msra.mxu0 0.0
    %557 = vmatpush.msra.mxu0 0.0
    %558 = vmatpush.msra.mxu0 0.0
    %559 = vmatpush.msra.mxu0 0.0
    %560 = vmatpush.msra.mxu0 0.0
    %561 = vmatpush.msra.mxu0 0.0
    %562 = vmatpush.msra.mxu0 0.0
    %563 = vmatpush.msra.mxu0 0.0
    %564 = vmatpush.msra.mxu0 0.0
    %565 = vmatpush.msra.mxu0 0.0
    %566 = vmatpush.msra.mxu0 0.0
    %567 = vmatpush.msra.mxu0 0.0
    %568 = vmatpush.msra.mxu0 %v339
    %569 = vmatpush.msra.mxu0 %v338
    %570 = vmatpush.msra.mxu0 %v337
    %571 = vmatpush.msra.mxu0 %v336
    %572 = vmatmul.f32.gmra.mxu0 %v554
    %v573 = vpop.f32.mrf.mxu0
    %v574 = vadd.f32 0.0, %v573
    %575 = vdwg.mxu0
    %v577 = vrot.slane %v574, 5
    %v579 = vadd.f32 %v74, %v577
    %v580 = vxor.u32 %v579, 2147483648
    %v581 = vmul.f32 %v580, 1.442695
    %v582 = vpow.pop %v581
    %v583 = vadd.f32 %v582, 1.0
    %v584 = vrcp.pop %v583
    %v585 = vmul.f32 %v583, %v584
    %v586 = vsub.f32 1.0, %v585
    %v587 = vmul.f32 %v584, %v586
    %v588 = vadd.f32 %v584, %v587
    %vm589 = vweird.f32 %v583
    %vm590 = vweird.f32 %v584
    %vm591 = vmor %vm589, %vm590
    %v592 = vsel %vm591, %v584, %v588
    %v593 = vand.u32 2147483647, %v583
    %vm594 = vcmp.eq.f32.partialorder %v593, 8.507059e+37
    %v595 = vand.u32 %v583, 2147483648
    %v596 = vor.u32 1.1754944e-38, %v595
    %v597 = vsel %vm594, %v596, %v592
    %v598 = vmul.f32 1.0, %v597
    %v599 = vadd.f32 %v574, %v385
    %v601 = vrot.slane %v599, 5
    %602 = vrot.lane.b32.xlu0 %v601, 64
    %v603 = vpop.permute.xlu0 %602
    %v605 = vmul.f32 %v598, %v603
    %607 = vrot.lane.b32.xlu0 %v605, 64
    %v608 = vpop.permute.xlu0 %607
    %v610 = vadd.f32 %v74, %v608
    %v611 = vtanh.pop %v610
    %v612 = vsub.f32 1.0, %v598
    %614 = vrot.lane.b32.xlu0 %v611, 96
    %v615 = vpop.permute.xlu0 %614
    %v617 = vmul.f32 %v612, %v615
    %v618 = vrot.slane %v549, 7
    %v620 = vmul.f32 %v598, %v618
    %v621 = vadd.f32 %v617, %v620
    %v623 = vrot.slane %v621, 3
    %624 = vrot.lane.b32.xlu0 %v623, 96
    %v625 = vpop.permute.xlu0 %624
    %v626 = vsel %vm312, %v625, 0
    %628 = vmatpush.msra.mxu0 0.0
    %629 = vmatpush.msra.mxu0 0.0
    %630 = vmatpush.msra.mxu0 0.0
    %631 = vmatpush.msra.mxu0 0.0
    %632 = vmatpush.msra.mxu0 0.0
    %633 = vmatpush.msra.mxu0 0.0
    %634 = vmatpush.msra.mxu0 0.0
    %635 = vmatpush.msra.mxu0 0.0
    %636 = vmatpush.msra.mxu0 0.0
    %637 = vmatpush.msra.mxu0 0.0
    %638 = vmatpush.msra.mxu0 0.0
    %639 = vmatpush.msra.mxu0 0.0
    %640 = vmatpush.msra.mxu0 %v339
    %641 = vmatpush.msra.mxu0 %v338
    %642 = vmatpush.msra.mxu0 %v337
    %643 = vmatpush.msra.mxu0 %v336
    %644 = vmatmul.f32.gmra.mxu0 %v626
    %v645 = vpop.f32.mrf.mxu0
    %v646 = vadd.f32 0.0, %v645
    %647 = vdwg.mxu0
    %v649 = vrot.slane %v646, 4
    %v651 = vadd.f32 %v74, %v649
    %v652 = vxor.u32 %v651, 2147483648
    %v653 = vmul.f32 %v652, 1.442695
    %v654 = vpow.pop %v653
    %v655 = vadd.f32 %v654, 1.0
    %v656 = vrcp.pop %v655
    %v657 = vmul.f32 %v655, %v656
    %v658 = vsub.f32 1.0, %v657
    %v659 = vmul.f32 %v656, %v658
    %v660 = vadd.f32 %v656, %v659
    %vm661 = vweird.f32 %v655
    %vm662 = vweird.f32 %v656
    %vm663 = vmor %vm661, %vm662
    %v664 = vsel %vm663, %v656, %v660
    %v665 = vand.u32 2147483647, %v655
    %vm666 = vcmp.eq.f32.partialorder %v665, 8.507059e+37
    %v667 = vand.u32 %v655, 2147483648
    %v668 = vor.u32 1.1754944e-38, %v667
    %v669 = vsel %vm666, %v668, %v664
    %v670 = vmul.f32 1.0, %v669
    %v671 = vadd.f32 %v646, %v385
    %v673 = vrot.slane %v671, 4
    %674 = vrot.lane.b32.xlu0 %v673, 64
    %v675 = vpop.permute.xlu0 %674
    %v677 = vmul.f32 %v670, %v675
    %679 = vrot.lane.b32.xlu0 %v677, 64
    %v680 = vpop.permute.xlu0 %679
    %v682 = vadd.f32 %v74, %v680
    %v683 = vtanh.pop %v682
    %v684 = vsub.f32 1.0, %v670
    %686 = vrot.lane.b32.xlu0 %v683, 96
    %v687 = vpop.permute.xlu0 %686
    %v689 = vmul.f32 %v684, %v687
    %v690 = vrot.slane %v621, 7
    %v692 = vmul.f32 %v670, %v690
    %v693 = vadd.f32 %v689, %v692
    %v695 = vrot.slane %v693, 4
    %696 = vrot.lane.b32.xlu0 %v695, 96
    %v697 = vpop.permute.xlu0 %696
    %v698 = vsel %vm312, %v697, 0
    %700 = vmatpush.msra.mxu0 0.0
    %701 = vmatpush.msra.mxu0 0.0
    %702 = vmatpush.msra.mxu0 0.0
    %703 = vmatpush.msra.mxu0 0.0
    %704 = vmatpush.msra.mxu0 0.0
    %705 = vmatpush.msra.mxu0 0.0
    %706 = vmatpush.msra.mxu0 0.0
    %707 = vmatpush.msra.mxu0 0.0
    %708 = vmatpush.msra.mxu0 0.0
    %709 = vmatpush.msra.mxu0 0.0
    %710 = vmatpush.msra.mxu0 0.0
    %711 = vmatpush.msra.mxu0 0.0
    %712 = vmatpush.msra.mxu0 %v339
    %713 = vmatpush.msra.mxu0 %v338
    %714 = vmatpush.msra.mxu0 %v337
    %715 = vmatpush.msra.mxu0 %v336
    %716 = vmatmul.f32.gmra.mxu0 %v698
    %v717 = vpop.f32.mrf.mxu0
    %v718 = vadd.f32 0.0, %v717
    %719 = vdwg.mxu0
    %v721 = vrot.slane %v718, 3
    %v723 = vadd.f32 %v74, %v721
    %v724 = vxor.u32 %v723, 2147483648
    %v725 = vmul.f32 %v724, 1.442695
    %v726 = vpow.pop %v725
    %v727 = vadd.f32 %v726, 1.0
    %v728 = vrcp.pop %v727
    %v729 = vmul.f32 %v727, %v728
    %v730 = vsub.f32 1.0, %v729
    %v731 = vmul.f32 %v728, %v730
    %v732 = vadd.f32 %v728, %v731
    %vm733 = vweird.f32 %v727
    %vm734 = vweird.f32 %v728
    %vm735 = vmor %vm733, %vm734
    %v736 = vsel %vm735, %v728, %v732
    %v737 = vand.u32 2147483647, %v727
    %vm738 = vcmp.eq.f32.partialorder %v737, 8.507059e+37
    %v739 = vand.u32 %v727, 2147483648
    %v740 = vor.u32 1.1754944e-38, %v739
    %v741 = vsel %vm738, %v740, %v736
    %v742 = vmul.f32 1.0, %v741
    %v743 = vadd.f32 %v718, %v385
    %v745 = vrot.slane %v743, 3
    %746 = vrot.lane.b32.xlu0 %v745, 64
    %v747 = vpop.permute.xlu0 %746
    %v749 = vmul.f32 %v742, %v747
    %751 = vrot.lane.b32.xlu0 %v749, 64
    %v752 = vpop.permute.xlu0 %751
    %v754 = vadd.f32 %v74, %v752
    %v755 = vtanh.pop %v754
    %v756 = vsub.f32 1.0, %v742
    %758 = vrot.lane.b32.xlu0 %v755, 96
    %v759 = vpop.permute.xlu0 %758
    %v761 = vmul.f32 %v756, %v759
    %v762 = vrot.slane %v693, 7
    %v764 = vmul.f32 %v742, %v762
    %v765 = vadd.f32 %v761, %v764
    %v767 = vrot.slane %v765, 5
    %768 = vrot.lane.b32.xlu0 %v767, 96
    %v769 = vpop.permute.xlu0 %768
    %v770 = vsel %vm312, %v769, 0
    %772 = vmatpush.msra.mxu0 0.0
    %773 = vmatpush.msra.mxu0 0.0
    %774 = vmatpush.msra.mxu0 0.0
    %775 = vmatpush.msra.mxu0 0.0
    %776 = vmatpush.msra.mxu0 0.0
    %777 = vmatpush.msra.mxu0 0.0
    %778 = vmatpush.msra.mxu0 0.0
    %779 = vmatpush.msra.mxu0 0.0
    %780 = vmatpush.msra.mxu0 0.0
    %781 = vmatpush.msra.mxu0 0.0
    %782 = vmatpush.msra.mxu0 0.0
    %783 = vmatpush.msra.mxu0 0.0
    %784 = vmatpush.msra.mxu0 %v339
    %785 = vmatpush.msra.mxu0 %v338
    %786 = vmatpush.msra.mxu0 %v337
    %787 = vmatpush.msra.mxu0 %v336
    %788 = vmatmul.f32.gmra.mxu0 %v770
    %v789 = vpop.f32.mrf.mxu0
    %v790 = vadd.f32 0.0, %v789
    %791 = vdwg.mxu0
    %v793 = vrot.slane %v790, 2
    %v795 = vadd.f32 %v74, %v793
    %v796 = vxor.u32 %v795, 2147483648
    %v797 = vmul.f32 %v796, 1.442695
    %v798 = vpow.pop %v797
    %v799 = vadd.f32 %v798, 1.0
    %v800 = vrcp.pop %v799
    %v801 = vmul.f32 %v799, %v800
    %v802 = vsub.f32 1.0, %v801
    %v803 = vmul.f32 %v800, %v802
    %v804 = vadd.f32 %v800, %v803
    %vm805 = vweird.f32 %v799
    %vm806 = vweird.f32 %v800
    %vm807 = vmor %vm805, %vm806
    %v808 = vsel %vm807, %v800, %v804
    %v809 = vand.u32 2147483647, %v799
    %vm810 = vcmp.eq.f32.partialorder %v809, 8.507059e+37
    %v811 = vand.u32 %v799, 2147483648
    %v812 = vor.u32 1.1754944e-38, %v811
    %v813 = vsel %vm810, %v812, %v808
    %v814 = vmul.f32 1.0, %v813
    %v815 = vadd.f32 %v790, %v385
    %v817 = vrot.slane %v815, 2
    %818 = vrot.lane.b32.xlu0 %v817, 64
    %v819 = vpop.permute.xlu0 %818
    %v821 = vmul.f32 %v814, %v819
    %823 = vrot.lane.b32.xlu0 %v821, 64
    %v824 = vpop.permute.xlu0 %823
    %v826 = vadd.f32 %v74, %v824
    %v827 = vtanh.pop %v826
    %v828 = vsub.f32 1.0, %v814
    %830 = vrot.lane.b32.xlu0 %v827, 96
    %v831 = vpop.permute.xlu0 %830
    %v833 = vmul.f32 %v828, %v831
    %v834 = vrot.slane %v765, 7
    %v836 = vmul.f32 %v814, %v834
    %v837 = vadd.f32 %v833, %v836
    %v839 = vrot.slane %v837, 6
    %840 = vrot.lane.b32.xlu0 %v839, 96
    %v841 = vpop.permute.xlu0 %840
    %v842 = vsel %vm312, %v841, 0
    %844 = vmatpush.msra.mxu0 0.0
    %845 = vmatpush.msra.mxu0 0.0
    %846 = vmatpush.msra.mxu0 0.0
    %847 = vmatpush.msra.mxu0 0.0
    %848 = vmatpush.msra.mxu0 0.0
    %849 = vmatpush.msra.mxu0 0.0
    %850 = vmatpush.msra.mxu0 0.0
    %851 = vmatpush.msra.mxu0 0.0
    %852 = vmatpush.msra.mxu0 0.0
    %853 = vmatpush.msra.mxu0 0.0
    %854 = vmatpush.msra.mxu0 0.0
    %855 = vmatpush.msra.mxu0 0.0
    %856 = vmatpush.msra.mxu0 %v339
    %857 = vmatpush.msra.mxu0 %v338
    %858 = vmatpush.msra.mxu0 %v337
    %859 = vmatpush.msra.mxu0 %v336
    %860 = vmatmul.f32.gmra.mxu0 %v842
    %v861 = vpop.f32.mrf.mxu0
    %v862 = vadd.f32 0.0, %v861
    %863 = vdwg.mxu0
    %v865 = vrot.slane %v862, 1
    %v867 = vadd.f32 %v74, %v865
    %v868 = vxor.u32 %v867, 2147483648
    %v869 = vmul.f32 %v868, 1.442695
    %v870 = vpow.pop %v869
    %v871 = vadd.f32 %v870, 1.0
    %v872 = vrcp.pop %v871
    %v873 = vmul.f32 %v871, %v872
    %v874 = vsub.f32 1.0, %v873
    %v875 = vmul.f32 %v872, %v874
    %v876 = vadd.f32 %v872, %v875
    %vm877 = vweird.f32 %v871
    %vm878 = vweird.f32 %v872
    %vm879 = vmor %vm877, %vm878
    %v880 = vsel %vm879, %v872, %v876
    %v881 = vand.u32 2147483647, %v871
    %vm882 = vcmp.eq.f32.partialorder %v881, 8.507059e+37
    %v883 = vand.u32 %v871, 2147483648
    %v884 = vor.u32 1.1754944e-38, %v883
    %v885 = vsel %vm882, %v884, %v880
    %v886 = vmul.f32 1.0, %v885
    %v887 = vadd.f32 %v862, %v385
    %v889 = vrot.slane %v887, 1
    %890 = vrot.lane.b32.xlu0 %v889, 64
    %v891 = vpop.permute.xlu0 %890
    %v893 = vmul.f32 %v886, %v891
    %895 = vrot.lane.b32.xlu0 %v893, 64
    %v896 = vpop.permute.xlu0 %895
    %v898 = vadd.f32 %v74, %v896
    %v899 = vtanh.pop %v898
    %v900 = vsub.f32 1.0, %v886
    %902 = vrot.lane.b32.xlu0 %v899, 96
    %v903 = vpop.permute.xlu0 %902
    %v905 = vmul.f32 %v900, %v903
    %v906 = vrot.slane %v837, 7
    %v908 = vmul.f32 %v886, %v906
    %v909 = vadd.f32 %v905, %v908
    %v910 = vmax.f32 %v909, 0.0
    %v912 = vrot.slane %v910, 7
    %913 = vrot.lane.b32.xlu0 %v912, 96
    %v914 = vpop.permute.xlu0 %913
    %v915 = vsel %vm312, %v914, 0
    %917 = vmatpush.msra.mxu0 0.0
    %918 = vmatpush.msra.mxu0 0.0
    %919 = vmatpush.msra.mxu0 0.0
    %920 = vmatpush.msra.mxu0 0.0
    %921 = vmatpush.msra.mxu0 0.0
    %922 = vmatpush.msra.mxu0 0.0
    %923 = vmatpush.msra.mxu0 0.0
    %924 = vmatpush.msra.mxu0 0.0
    %925 = vmatpush.msra.mxu0 0.0
    %926 = vmatpush.msra.mxu0 0.0
    %927 = vmatpush.msra.mxu0 0.0
    %928 = vmatpush.msra.mxu0 0.0
    %929 = vmatpush.msra.mxu0 %v31
    %930 = vmatpush.msra.mxu0 %v30
    %931 = vmatpush.msra.mxu0 %v29
    %932 = vmatpush.msra.mxu0 %v28
    %933 = vmatmul.f32.gmra.mxu0 %v915
    %v934 = vpop.f32.mrf.mxu0
    %v935 = vadd.f32 %v334, %v934
    %936 = vdwg.mxu0
    %v937 = vmax.f32 %v935, 0.0
    %v938 = vrot.slane %v27, 4
    %vm940 = vcmask 130048
    %v942 = vsel %vm940, %v937, 0
    %944 = vmatpush.msra.mxu0 0.0
    %945 = vmatpush.msra.mxu0 0.0
    %946 = vmatpush.msra.mxu0 0.0
    %947 = vmatpush.msra.mxu0 0.0
    %948 = vmatpush.msra.mxu0 0.0
    %949 = vmatpush.msra.mxu0 0.0
    %950 = vmatpush.msra.mxu0 0.0
    %951 = vmatpush.msra.mxu0 0.0
    %952 = vmatpush.msra.mxu0 0.0
    %953 = vmatpush.msra.mxu0 0.0
    %954 = vmatpush.msra.mxu0 0.0
    %955 = vmatpush.msra.mxu0 0.0
    %956 = vmatpush.msra.mxu0 0.0
    %957 = vmatpush.msra.mxu0 0.0
    %958 = vmatpush.msra.mxu0 %v37
    %959 = vmatpush.msra.mxu0 %v36
    %960 = vmatmul.f32.gmra.mxu0 %v942
    %v961 = vpop.f32.mrf.mxu0
    %v962 = vadd.f32 %v938, %v961
    %963 = vdwg.mxu0
    %vm964 = vcmask 24576
    %965 = vst.msk [vmem:[#allocation2] sm:$0x1] %vm964, %v962
    // Predicated region
    $region30: #{multi_model_forward.1} parent=1 // pred_check
      _
    $region31: #{multi_model_forward.1} parent=1 // pred_check_branch
      %967 = sbr.rel (0) target = $region33
    $region32: #{multi_model_forward.1} parent=1 // pred_region
      %969 = vsyncadd [#allocation3], 0
      %s971 = sshll.u32 [#allocation2], 4
      %s972 = int_to_ptr.vmem [resolvable:$true] %s971
      %s973 = sshll.u32 %s7, 4
      %s974 = int_to_ptr.hbm [resolvable:$true] %s973
      %976 = dma.vmem_to_hbm [thread:$0]  %s972, 16, %s974, [#allocation3]
    $region33: #{multi_model_forward.1} parent=1 // pred_fallthru
      _
    // Predicated region
    $region34: #{multi_model_forward.1} parent=1 // pred_check
      _
    $region35: #{multi_model_forward.1} parent=1 // pred_check_branch
      %978 = sbr.rel (0) target = $region37
    $region36: #{multi_model_forward.1} parent=1 // pred_region
      %980 = dma.done [#allocation3], 16
    $region37: #{multi_model_forward.1} parent=1 // pred_fallthru
      _
    %981 = vsyncpa [#allocation3], 1

</llo_original>
